<compile_context>
chip_gen: v7x
topology: tpu7x:2x2x1
jax: 0.10.0
libtpu: 0.0.40
codegen_flags: <defaults>
</compile_context>

<pallas_src>
import jax
import jax.numpy as jnp
from jax import lax
from jax.experimental import pallas as pl
from jax.experimental.pallas import tpu as pltpu

_LAMBDA = 0.01     # FreMLP sparsity_threshold
_LN_EPS = 1e-5     # BPDRLayer LayerNorm eps


def _round_up(n, m):
    return ((n + m - 1) // m) * m


def _pick_tile(n, pref=512):
    """Row-tile size (multiple of 8) and padded row count (multiple of tile)."""
    if n <= pref:
        t = _round_up(max(n, 8), 8)
        return t, t
    return pref, _round_up(n, pref)


def _pick_edge_tile(n, pref=512):
    """Edge row tile + padded row count.  Keeps the grid length >= 2 whenever
    n > 8 so dimension_semantics=("parallel",) can actually split work across
    v7x's two TensorCores (harmless on single-TC v5e/v6e)."""
    if n <= 8:
        t = _round_up(max(n, 1), 8)
        return t, t
    if n <= 2 * pref:
        t = _round_up(-(-n // 2), 8)       # two tiles
        return t, 2 * t
    return pref, _round_up(n, pref)


def _vmem_limit_bytes(requested):
    """Clamp the requested scoped-VMEM to 3/4 of the chip's capacity
    (~48 MiB on v7x's 64 MiB/TC, ~96 MiB on v5e/v6e's 128 MiB)."""
    try:
        cap = pltpu.get_tpu_info().vmem_capacity_bytes
    except Exception:
        cap = 64 << 20                      # conservative default: v7x per-TC VMEM
    ceiling = (cap * 3) // 4
    return int(min(max(requested, 8 << 20), ceiling))


def _dft_mats(n):
    """cos/sin DFT matrices, angles reduced mod n for f32 accuracy."""
    idx = jnp.arange(n, dtype=jnp.int32)
    k = (idx[:, None] * idx[None, :]) % n
    ang = (2.0 * jnp.pi / n) * k.astype(jnp.float32)
    return jnp.cos(ang), jnp.sin(ang)


def _dot_hi(a, b):
    return jnp.dot(a, b, precision=lax.Precision.HIGHEST)


# -----------------------------------------------------------------------------
# Host-side folding of FreMLP + combine_linear weights (compute once, reuse).
# -----------------------------------------------------------------------------
def prepare_msg_constants(params, input_dim):
    d = params["r1_low"].shape[1]
    n3 = 3 * d
    c6 = 6 * d
    c6p = _round_up(c6, 256)               # MXU-aligned (one 256 pass v6e/v7x, 2x128 v5e)
    dp = _round_up(d, 128)                 # lane-dense output store

    cf, sf = _dft_mats(input_dim)          # (L, L)
    ci, si = _dft_mats(n3)                 # (3D, 3D)

    r_cat = jnp.concatenate([params["r1_low"], params["r1_mid"], params["r1_high"]], axis=1)
    i_cat = jnp.concatenate([params["i1_low"], params["i1_mid"], params["i1_high"]], axis=1)
    # x_fft = x@cf - i*(x@sf);  pre-mask o_real = x @ w_r,  pre-mask o_imag = x @ w_i
    w_r = _dot_hi(cf, r_cat) + _dot_hi(sf, i_cat)                  # (L, 3D)
    w_i = _dot_hi(cf, i_cat) - _dot_hi(sf, r_cat)                  # (L, 3D)
    w_fwd = jnp.concatenate([w_r, w_i], axis=1)                    # (L, 6D)
    b6 = jnp.concatenate([params["rb1_low"], params["rb1_mid"], params["rb1_high"],
                          params["ib1_low"], params["ib1_mid"], params["ib1_high"]])
    b6 = b6.reshape(1, c6)

    # Re(IFFT) + FreMLP.linear + combine_linear (imag inputs are 0 -> even cols only).
    wc_even_t = params["w_comb"][:, 0::2].T                        # (D, D)
    a = _dot_hi(params["fre_w"].T, wc_even_t)                      # (3D, D)
    cw = _dot_hi(ci, a) / n3
    sw = _dot_hi(si, a) / n3
    w_out = jnp.concatenate([cw, -sw], axis=0)                     # (6D, D)
    b_out = _dot_hi(params["fre_b"], wc_even_t) + params["b_comb"]  # (D,)

    # Zero-pad 6D -> c6p and D -> dp (exact: padded bias 0 -> relu/softshrink -> 0).
    w_fwd = jnp.pad(w_fwd, ((0, 0), (0, c6p - c6)))
    b6 = jnp.pad(b6, ((0, 0), (0, c6p - c6)))
    w_out = jnp.pad(w_out, ((0, c6p - c6), (0, dp - d)))
    b_out = jnp.pad(b_out, (0, dp - d)).reshape(1, dp)

    # One-hot band selectors over the padded 6D columns (low / mid / high).
    col = jnp.arange(c6p)
    band_id = (col // d) % 3
    valid = col < c6
    sel = jnp.stack([jnp.where(valid & (band_id == b), 1.0, 0.0) for b in range(3)],
                    axis=0).astype(jnp.float32)                    # (3, c6p)

    # bf16 MXU operands with f32 accumulation; biases/selectors stay f32 (VPU side).
    return (w_fwd.astype(jnp.bfloat16), b6.astype(jnp.float32), sel,
            w_out.astype(jnp.bfloat16), b_out.astype(jnp.float32), d)


# -----------------------------------------------------------------------------
# Kernel 1: fused FreMLP + combine_linear over an edge-batch tile.
# -----------------------------------------------------------------------------
def _msg_kernel(thr_ref, x_ref, en_ref, sel_ref, wf_ref, b6_ref, wo_ref, bo_ref, out_ref):
    f32 = jnp.float32

    # Band masks from precomputed per-row Parseval energies vs SMEM thresholds.
    en = en_ref[...]                                   # (TB, 1) f32
    t1 = thr_ref[0]
    t2 = thr_ref[1]
    m_lo = (en <= t1).astype(f32)
    m_hi = (en > t2).astype(f32)
    m_mi = 1.0 - m_lo - m_hi                           # bands partition (t1 <= t2)
    mask = (m_lo * sel_ref[0:1, :] + m_mi * sel_ref[1:2, :] + m_hi * sel_ref[2:3, :])

    # All three band MLPs (+ folded DFT) as one bf16 matmul: (TB,L) x (L,6Dp).
    t = jnp.dot(x_ref[...], wf_ref[...], preferred_element_type=f32)
    o = mask * t + b6_ref[...]
    y = jnp.maximum(o, 0.0)                            # relu
    y = jnp.where(y > _LAMBDA, y - _LAMBDA, 0.0)       # softshrink (y >= 0 after relu)

    # Re(IFFT) + FreMLP.linear + combine_linear as one bf16 matmul: (TB,6Dp) x (6Dp,Dp).
    out_ref[...] = (jnp.dot(y.astype(jnp.bfloat16), wo_ref[...],
                            preferred_element_type=f32) + bo_ref[...]).astype(out_ref.dtype)


def _msg_pallas(x, consts):
    w_fwd, b6, sel, w_out, b_out, d = consts
    e, l = x.shape
    if e == 0:                                          # empty edge set guard
        return jnp.zeros((0, d), jnp.float32)
    c6p = w_fwd.shape[1]
    dp = w_out.shape[1]

    # Batch-global band thresholds + per-edge energies: plain-JAX f32 pre-pass
    # (Parseval: sum|FFT(x)|^2 == L * sum(x^2)).  FFT outputs never materialize.
    energy = float(l) * jnp.sum(x * x, axis=-1, keepdims=True)      # (E, 1) f32
    emin = energy.min()
    emax = energy.max()
    thr = jnp.stack([(2.0 * emin + emax) / 3.0,
                     (emin + 2.0 * emax) / 3.0]).astype(jnp.float32)

    x_bf = x.astype(jnp.bfloat16)                       # halve the dominant read stream
    tb, eb = _pick_edge_tile(e, 512)
    if eb != e:
        x_bf = jnp.pad(x_bf, ((0, eb - e), (0, 0)))
        energy = jnp.pad(energy, ((0, eb - e), (0, 0)))

    # VMEM budget: double-buffered x/energy/out tiles + resident weights + headroom.
    req = (2 * tb * (l * 2 + 4 + dp * 2)
           + 2 * (l * c6p + c6p * dp) * 2
           + 2 * (4 * c6p + c6p * 4 + dp * 4)
           + (4 << 20))

    out = pl.pallas_call(
        _msg_kernel,
        grid=(eb // tb,),
        in_specs=[
            pl.BlockSpec(memory_space=pltpu.MemorySpace.SMEM),      # thresholds (2,)
            pl.BlockSpec((tb, l), lambda b: (b, 0)),                # edge-tile of x (bf16)
            pl.BlockSpec((tb, 1), lambda b: (b, 0)),                # per-edge energy (f32)
            pl.BlockSpec((3, c6p), lambda b: (0, 0)),               # band selectors
            pl.BlockSpec((l, c6p), lambda b: (0, 0)),               # folded fwd weight
            pl.BlockSpec((1, c6p), lambda b: (0, 0)),               # fwd biases
            pl.BlockSpec((c6p, dp), lambda b: (0, 0)),              # folded out weight
            pl.BlockSpec((1, dp), lambda b: (0, 0)),                # out bias
        ],
        out_specs=pl.BlockSpec((tb, dp), lambda b: (b, 0)),
        out_shape=jax.ShapeDtypeStruct((eb, dp), jnp.bfloat16),     # lane-dense bf16 store
        compiler_params=pltpu.CompilerParams(
            dimension_semantics=("parallel",),
            vmem_limit_bytes=_vmem_limit_bytes(req)),
    )(thr, x_bf, energy, sel, w_fwd, b6, w_out, b_out)
    return out[:e, :d]


# -----------------------------------------------------------------------------
# Kernel 2: node-side linear + LayerNorm + ReLU (lane-dense 128-padded slab).
# -----------------------------------------------------------------------------
def _node_kernel(agg_ref, w_ref, b_ref, g_ref, bb_ref, out_ref):
    f32 = jnp.float32
    d = agg_ref.shape[1]                                # real feature count
    # Padded weight columns / bias are zero -> padded lanes of h are exactly 0,
    # so sum / sum-of-squares over the padded slab equal the real-lane sums.
    h = jnp.dot(agg_ref[...], w_ref[...], preferred_element_type=f32) + b_ref[...]
    s1 = jnp.sum(h, axis=-1, keepdims=True)
    s2 = jnp.sum(h * h, axis=-1, keepdims=True)
    mu = s1 / d
    var = jnp.maximum(s2 / d - mu * mu, 0.0)
    hn = (h - mu) * lax.rsqrt(var + _LN_EPS)
    out_ref[...] = jnp.maximum(hn * g_ref[...] + bb_ref[...], 0.0)  # padded lanes -> 0


def _node_pallas(agg, params):
    n, d = agg.shape
    dp = _round_up(d, 128)
    w_t = jnp.pad(params["w_node"].T, ((0, 0), (0, dp - d)))        # (d, dp)
    b = jnp.pad(params["b_node"], (0, dp - d)).reshape(1, dp)
    g = jnp.pad(params["ln_g"], (0, dp - d)).reshape(1, dp)
    bb = jnp.pad(params["ln_b"], (0, dp - d)).reshape(1, dp)
    tn, nb = _pick_tile(n, 512)
    ap = agg if nb == n else jnp.pad(agg, ((0, nb - n), (0, 0)))
    out = pl.pallas_call(
        _node_kernel,
        grid=(nb // tn,),
        in_specs=[pl.BlockSpec((tn, d), lambda i: (i, 0)),
                  pl.BlockSpec((d, dp), lambda i: (0, 0)),
                  pl.BlockSpec((1, dp), lambda i: (0, 0)),
                  pl.BlockSpec((1, dp), lambda i: (0, 0)),
                  pl.BlockSpec((1, dp), lambda i: (0, 0))],
        out_specs=pl.BlockSpec((tn, dp), lambda i: (i, 0)),
        out_shape=jax.ShapeDtypeStruct((nb, dp), jnp.float32),
        compiler_params=pltpu.CompilerParams(dimension_semantics=("parallel",)),
    )(ap, w_t, b, g, bb)
    return out[:n, :d]


# -----------------------------------------------------------------------------
# Full BPDRLayer forward (inference semantics).
# -----------------------------------------------------------------------------
def bpdr_forward(hidden, edge_index, edge_attr, edge_time_emb, boundary_condition,
                 params, msg_consts=None, reduce="sum"):
    assert hidden.shape == boundary_condition.shape
    num_nodes = hidden.shape[0]
    hidden = hidden.astype(jnp.float32)
    edge_attr = edge_attr.astype(jnp.float32)
    edge_time_emb = edge_time_emb.astype(jnp.float32)
    boundary_condition = boundary_condition.astype(jnp.float32)

    # TODO(synk): edge gather / scatter-reduce are data-dependent; kept in plain JAX
    # (jnp.take / jax.ops.segment_sum) rather than a Pallas DMA-gather kernel.
    msg_input = jnp.concatenate(
        [jnp.take(hidden, edge_index[0], axis=0), edge_attr, edge_time_emb], axis=1)

    if msg_consts is None:   # hoist & cache in real use (constant per parameter set)
        msg_consts = prepare_msg_constants(params, msg_input.shape[1])
    # Kernel stores bf16; accumulate the segment reduction in f32.
    msg = _msg_pallas(msg_input, msg_consts).astype(jnp.float32)

    msg_aug = jnp.concatenate([msg, boundary_condition], axis=0)
    idx_aug = jnp.concatenate(
        [edge_index[1], jnp.arange(num_nodes, dtype=edge_index.dtype)], axis=0)
    agg = jax.ops.segment_sum(msg_aug, idx_aug, num_segments=num_nodes)
    if reduce == "mean":
        cnt = jax.ops.segment_sum(jnp.ones((idx_aug.shape[0],), jnp.float32),
                                  idx_aug, num_segments=num_nodes)
        agg = agg / jnp.maximum(cnt, 1.0)[:, None]
    elif reduce != "sum":
        raise NotImplementedError(f"reduce={reduce}")

    # TODO(synk): dropout(p=0.1) is identity in eval mode; training-mode dropout omitted.
    return _node_pallas(agg, params)


# -----------------------------------------------------------------------------
# Pure-JAX reference mirroring the PyTorch modules (uses jnp.fft).
# -----------------------------------------------------------------------------
def fremlp_reference(x, p, lam=_LAMBDA):
    xf = jnp.fft.fft(x.astype(jnp.complex64))
    energy = jnp.sum(jnp.abs(xf) ** 2, axis=-1)
    emin, emax = energy.min(), energy.max()
    t1 = (2.0 * emin + emax) / 3.0
    t2 = (emin + 2.0 * emax) / 3.0
    m_lo = (energy <= t1).astype(jnp.float32)[:, None]
    m_mi = ((energy > t1) & (energy <= t2)).astype(jnp.float32)[:, None]
    m_hi = (energy > t2).astype(jnp.float32)[:, None]

    def softshrink(v):
        return jnp.where(v > lam, v - lam, jnp.where(v < -lam, v + lam, 0.0))

    def band(m, r1, i1, rb, ib):
        xm = xf * m
        o_r = _dot_hi(xm.real, r1) - _dot_hi(xm.imag, i1) + rb
        o_i = _dot_hi(xm.imag, r1) + _dot_hi(xm.real, i1) + ib
        return softshrink(jax.nn.relu(o_r)) + 1j * softshrink(jax.nn.relu(o_i))

    y_lo = band(m_lo, p["r1_low"], p["i1_low"], p["rb1_low"], p["ib1_low"])
    y_mi = band(m_mi, p["r1_mid"], p["i1_mid"], p["rb1_mid"], p["ib1_mid"])
    y_hi = band(m_hi, p["r1_high"], p["i1_high"], p["rb1_high"], p["ib1_high"])
    y = jnp.fft.ifft(jnp.concatenate([y_lo, y_mi, y_hi], axis=-1))
    return _dot_hi(y.real, p["fre_w"].T) + p["fre_b"]


def bpdr_reference(hidden, edge_index, edge_attr, edge_time_emb, boundary, p, reduce="sum"):
    n = hidden.shape[0]
    msg_input = jnp.concatenate([hidden[edge_index[0]].astype(jnp.float32),
                                 edge_attr.astype(jnp.float32),
                                 edge_time_emb.astype(jnp.float32)], axis=1)
    msg = fremlp_reference(msg_input, p)
    msg_real = jnp.stack([msg, jnp.zeros_like(msg)], axis=-1).reshape(msg.shape[0], -1)
    msg = _dot_hi(msg_real, p["w_comb"].T) + p["b_comb"]
    msg_aug = jnp.concatenate([msg, boundary.astype(jnp.float32)], axis=0)
    idx_aug = jnp.concatenate([edge_index[1], jnp.arange(n, dtype=edge_index.dtype)])
    agg = jax.ops.segment_sum(msg_aug, idx_aug, num_segments=n)
    if reduce == "mean":
        cnt = jax.ops.segment_sum(jnp.ones((idx_aug.shape[0],), jnp.float32),
                                  idx_aug, num_segments=n)
        agg = agg / jnp.maximum(cnt, 1.0)[:, None]
    out = _dot_hi(agg, p["w_node"].T) + p["b_node"]
    mu = out.mean(axis=-1, keepdims=True)
    var = jnp.mean((out - mu) ** 2, axis=-1, keepdims=True)
    out = (out - mu) / jnp.sqrt(var + _LN_EPS) * p["ln_g"] + p["ln_b"]
    return jax.nn.relu(out)          # dropout is identity in eval mode


if __name__ == "__main__":
    emb_dim, edge_attr_size, edge_time_emb_size = 32, 8, 8
    num_nodes, num_edges = 16, 64
    input_dim = emb_dim + edge_attr_size + edge_time_emb_size   # FreMLP input_dim
    d = emb_dim

    key = jax.random.PRNGKey(0)
    ks = jax.random.split(key, 25)
    scale = 0.02

    def nrm(k, shape, s=1.0):
        return s * jax.random.normal(k, shape, jnp.float32)

    params = {
        "r1_low":   nrm(ks[0],  (input_dim, d), scale),
        "i1_low":   nrm(ks[1],  (input_dim, d), scale),
        "rb1_low":  nrm(ks[2],  (d,), scale),
        "ib1_low":  nrm(ks[3],  (d,), scale),
        "r1_mid":   nrm(ks[4],  (input_dim, d), scale),
        "i1_mid":   nrm(ks[5],  (input_dim, d), scale),
        "rb1_mid":  nrm(ks[6],  (d,), scale),
        "ib1_mid":  nrm(ks[7],  (d,), scale),
        "r1_high":  nrm(ks[8],  (input_dim, d), scale),
        "i1_high":  nrm(ks[9],  (input_dim, d), scale),
        "rb1_high": nrm(ks[10], (d,), scale),
        "ib1_high": nrm(ks[11], (d,), scale),
        # torch nn.Linear layouts: weight (out, in), bias (out,)
        "fre_w":  nrm(ks[12], (d, 3 * d), 1.0 / (3.0 * d) ** 0.5),
        "fre_b":  nrm(ks[13], (d,),       1.0 / (3.0 * d) ** 0.5),
        "w_comb": nrm(ks[14], (d, 2 * d), 1.0 / (2.0 * d) ** 0.5),
        "b_comb": nrm(ks[15], (d,),       1.0 / (2.0 * d) ** 0.5),
        "w_node": nrm(ks[16], (d, d), 1.0 / d ** 0.5),
        "b_node": nrm(ks[17], (d,),   1.0 / d ** 0.5),
        "ln_g": 1.0 + nrm(ks[18], (d,), 0.1),
        "ln_b": nrm(ks[19], (d,), 0.1),
    }

    hidden = nrm(ks[20], (num_nodes, emb_dim))
    boundary_condition = nrm(ks[21], (num_nodes, emb_dim))
    edge_attr = nrm(ks[22], (num_edges, edge_attr_size))
    edge_time_emb = nrm(ks[23], (num_edges, edge_time_emb_size))
    edge_index = jax.random.randint(ks[24], (2, num_edges), 0, num_nodes, dtype=jnp.int32)

    # Folded FreMLP/combine constants: computed once, reused across forward calls.
    msg_consts = prepare_msg_constants(params, input_dim)

    out = jax.block_until_ready(
        bpdr_forward(hidden, edge_index, edge_attr, edge_time_emb,
                     boundary_condition, params, msg_consts=msg_consts, reduce="sum"))
    ref = bpdr_reference(hidden, edge_index, edge_attr, edge_time_emb,
                         boundary_condition, params, reduce="sum")

    assert out.shape == (num_nodes, emb_dim), out.shape
    max_err = float(jnp.max(jnp.abs(out - ref)))
    # bf16 MXU operands + bf16 msg store -> slightly looser tolerance than pure f32.
    assert max_err < 3e-2, f"max abs err {max_err}"
    print("KERNEL_OK")
</pallas_src>

<mosaic_0001>
module attributes {stable_mosaic.version = 11 : i64} {
  func.func @_msg_kernel(%arg0: i32, %arg1: memref<2xf32, #tpu.memory_space<smem>>, %arg2: memref<32x48xbf16, #tpu.memory_space<vmem>>, %arg3: memref<32x1xf32, #tpu.memory_space<vmem>>, %arg4: memref<3x256xf32, #tpu.memory_space<vmem>>, %arg5: memref<48x256xbf16, #tpu.memory_space<vmem>>, %arg6: memref<1x256xf32, #tpu.memory_space<vmem>>, %arg7: memref<256x128xbf16, #tpu.memory_space<vmem>>, %arg8: memref<1x128xf32, #tpu.memory_space<vmem>>, %arg9: memref<32x128xbf16, #tpu.memory_space<vmem>>) attributes {dimension_semantics = [#tpu.dimension_semantics<parallel>], iteration_bounds = array<i64: 2>, scalar_prefetch = 0 : i64, scratch_operands = 0 : i64, tpu.core_type = #tpu.core_type<tc>, window_params = [{transform_indices = @transform_0, window_bounds = array<i64: 2>}, {transform_indices = @transform_1, window_bounds = array<i64: 32, 48>}, {transform_indices = @transform_2, window_bounds = array<i64: 32, 1>}, {pipeline_mode = #tpu.pipeline_mode<synchronous>, transform_indices = @transform_3, window_bounds = array<i64: 3, 256>}, {pipeline_mode = #tpu.pipeline_mode<synchronous>, transform_indices = @transform_4, window_bounds = array<i64: 48, 256>}, {pipeline_mode = #tpu.pipeline_mode<synchronous>, transform_indices = @transform_5, window_bounds = array<i64: 1, 256>}, {pipeline_mode = #tpu.pipeline_mode<synchronous>, transform_indices = @transform_6, window_bounds = array<i64: 256, 128>}, {pipeline_mode = #tpu.pipeline_mode<synchronous>, transform_indices = @transform_7, window_bounds = array<i64: 1, 128>}, {transform_indices = @transform_8, window_bounds = array<i64: 32, 128>}]} {
    %c0 = arith.constant 0 : index
    %c0_0 = arith.constant 0 : index
    %0 = vector.load %arg3[%c0, %c0_0] : memref<32x1xf32, #tpu.memory_space<vmem>>, vector<32x1xf32>
    %c0_1 = arith.constant 0 : index
    %1 = memref.load %arg1[%c0_1] : memref<2xf32, #tpu.memory_space<smem>>
    %c1 = arith.constant 1 : index
    %2 = memref.load %arg1[%c1] : memref<2xf32, #tpu.memory_space<smem>>
    %3 = vector.broadcast %1 : f32 to vector<32x1xf32>
    %4 = arith.cmpf ole, %0, %3 : vector<32x1xf32>
    %5 = arith.extui %4 : vector<32x1xi1> to vector<32x1xi32>
    %6 = arith.sitofp %5 : vector<32x1xi32> to vector<32x1xf32>
    %7 = vector.broadcast %2 : f32 to vector<32x1xf32>
    %8 = arith.cmpf ogt, %0, %7 : vector<32x1xf32>
    %9 = arith.extui %8 : vector<32x1xi1> to vector<32x1xi32>
    %10 = arith.sitofp %9 : vector<32x1xi32> to vector<32x1xf32>
    %cst = arith.constant 1.000000e+00 : f32
    %11 = vector.broadcast %cst : f32 to vector<32x1xf32>
    %12 = arith.subf %11, %6 : vector<32x1xf32>
    %13 = arith.subf %12, %10 : vector<32x1xf32>
    %c0_2 = arith.constant 0 : index
    %c0_3 = arith.constant 0 : index
    %14 = vector.load %arg4[%c0_2, %c0_3] : memref<3x256xf32, #tpu.memory_space<vmem>>, vector<1x256xf32>
    %15 = vector.broadcast %6 : vector<32x1xf32> to vector<32x256xf32>
    %16 = vector.broadcast %14 : vector<1x256xf32> to vector<32x256xf32>
    %17 = arith.mulf %15, %16 : vector<32x256xf32>
    %c1_4 = arith.constant 1 : index
    %c0_5 = arith.constant 0 : index
    %18 = vector.load %arg4[%c1_4, %c0_5] : memref<3x256xf32, #tpu.memory_space<vmem>>, vector<1x256xf32>
    %19 = vector.broadcast %13 : vector<32x1xf32> to vector<32x256xf32>
    %20 = vector.broadcast %18 : vector<1x256xf32> to vector<32x256xf32>
    %21 = arith.mulf %19, %20 : vector<32x256xf32>
    %22 = arith.addf %17, %21 : vector<32x256xf32>
    %c2 = arith.constant 2 : index
    %c0_6 = arith.constant 0 : index
    %23 = vector.load %arg4[%c2, %c0_6] : memref<3x256xf32, #tpu.memory_space<vmem>>, vector<1x256xf32>
    %24 = vector.broadcast %10 : vector<32x1xf32> to vector<32x256xf32>
    %25 = vector.broadcast %23 : vector<1x256xf32> to vector<32x256xf32>
    %26 = arith.mulf %24, %25 : vector<32x256xf32>
    %27 = arith.addf %22, %26 : vector<32x256xf32>
    %c0_7 = arith.constant 0 : index
    %c0_8 = arith.constant 0 : index
    %28 = vector.load %arg2[%c0_7, %c0_8] : memref<32x48xbf16, #tpu.memory_space<vmem>>, vector<32x48xbf16>
    %c0_9 = arith.constant 0 : index
    %c0_10 = arith.constant 0 : index
    %29 = vector.load %arg5[%c0_9, %c0_10] : memref<48x256xbf16, #tpu.memory_space<vmem>>, vector<48x256xbf16>
    %cst_11 = arith.constant dense<0.000000e+00> : vector<32x256xf32>
    %30 = tpu.matmul %28, %29, %cst_11 {dimension_numbers = #tpu.dot_dimension_numbers<[1], [0], [0], [1], [0, 0, 1, 1], [], []>} : vector<32x48xbf16>, vector<48x256xbf16>, vector<32x256xf32> -> vector<32x256xf32>
    %31 = arith.mulf %27, %30 : vector<32x256xf32>
    %c0_12 = arith.constant 0 : index
    %c0_13 = arith.constant 0 : index
    %32 = vector.load %arg6[%c0_12, %c0_13] : memref<1x256xf32, #tpu.memory_space<vmem>>, vector<1x256xf32>
    %33 = vector.broadcast %32 : vector<1x256xf32> to vector<32x256xf32>
    %34 = arith.addf %31, %33 : vector<32x256xf32>
    %cst_14 = arith.constant 0.000000e+00 : f32
    %35 = vector.broadcast %cst_14 : f32 to vector<32x256xf32>
    %36 = arith.maximumf %34, %35 : vector<32x256xf32>
    %cst_15 = arith.constant 0.00999999977 : f32
    %37 = vector.broadcast %cst_15 : f32 to vector<32x256xf32>
    %38 = arith.cmpf ogt, %36, %37 : vector<32x256xf32>
    %cst_16 = arith.constant 0.00999999977 : f32
    %39 = vector.broadcast %cst_16 : f32 to vector<32x256xf32>
    %40 = arith.subf %36, %39 : vector<32x256xf32>
    %cst_17 = arith.constant 0.000000e+00 : f32
    %41 = vector.broadcast %cst_17 : f32 to vector<32x256xf32>
    %42 = arith.select %38, %40, %41 : vector<32x256xi1>, vector<32x256xf32>
    %43 = arith.truncf %42 : vector<32x256xf32> to vector<32x256xbf16>
    %c0_18 = arith.constant 0 : index
    %c0_19 = arith.constant 0 : index
    %44 = vector.load %arg7[%c0_18, %c0_19] : memref<256x128xbf16, #tpu.memory_space<vmem>>, vector<256x128xbf16>
    %cst_20 = arith.constant dense<0.000000e+00> : vector<32x128xf32>
    %45 = tpu.matmul %43, %44, %cst_20 {dimension_numbers = #tpu.dot_dimension_numbers<[1], [0], [0], [1], [0, 0, 1, 1], [], []>} : vector<32x256xbf16>, vector<256x128xbf16>, vector<32x128xf32> -> vector<32x128xf32>
    %c0_21 = arith.constant 0 : index
    %c0_22 = arith.constant 0 : index
    %46 = vector.load %arg8[%c0_21, %c0_22] : memref<1x128xf32, #tpu.memory_space<vmem>>, vector<1x128xf32>
    %47 = vector.broadcast %46 : vector<1x128xf32> to vector<32x128xf32>
    %48 = arith.addf %45, %47 : vector<32x128xf32>
    %49 = arith.truncf %48 : vector<32x128xf32> to vector<32x128xbf16>
    %c0_23 = arith.constant 0 : index
    %c0_24 = arith.constant 0 : index
    %50 = vector.load %arg9[%c0_23, %c0_24] : memref<32x128xbf16, #tpu.memory_space<vmem>>, vector<32x128xbf16>
    tpu.vector_store %arg9[%c0_23, %c0_24], %49 {strides = array<i32>} : memref<32x128xbf16, #tpu.memory_space<vmem>>, vector<32x128xbf16>,
    return
  }
  func.func @transform_0(%arg0: i32) -> i32 {
    %c0_i32 = arith.constant 0 : i32
    %c0_i32_0 = arith.constant 0 : i32
    return %c0_i32 : i32
  }
  func.func @transform_1(%arg0: i32) -> (i32, i32) {
    %c0_i32 = arith.constant 0 : i32
    %c0_i32_0 = arith.constant 0 : i32
    return %arg0, %c0_i32 : i32, i32
  }
  func.func @transform_2(%arg0: i32) -> (i32, i32) {
    %c0_i32 = arith.constant 0 : i32
    %c0_i32_0 = arith.constant 0 : i32
    return %arg0, %c0_i32 : i32, i32
  }
  func.func @transform_3(%arg0: i32) -> (i32, i32) {
    %c0_i32 = arith.constant 0 : i32
    %c0_i32_0 = arith.constant 0 : i32
    %c0_i32_1 = arith.constant 0 : i32
    return %c0_i32, %c0_i32_0 : i32, i32
  }
  func.func @transform_4(%arg0: i32) -> (i32, i32) {
    %c0_i32 = arith.constant 0 : i32
    %c0_i32_0 = arith.constant 0 : i32
    %c0_i32_1 = arith.constant 0 : i32
    return %c0_i32, %c0_i32_0 : i32, i32
  }
  func.func @transform_5(%arg0: i32) -> (i32, i32) {
    %c0_i32 = arith.constant 0 : i32
    %c0_i32_0 = arith.constant 0 : i32
    %c0_i32_1 = arith.constant 0 : i32
    return %c0_i32, %c0_i32_0 : i32, i32
  }
  func.func @transform_6(%arg0: i32) -> (i32, i32) {
    %c0_i32 = arith.constant 0 : i32
    %c0_i32_0 = arith.constant 0 : i32
    %c0_i32_1 = arith.constant 0 : i32
    return %c0_i32, %c0_i32_0 : i32, i32
  }
  func.func @transform_7(%arg0: i32) -> (i32, i32) {
    %c0_i32 = arith.constant 0 : i32
    %c0_i32_0 = arith.constant 0 : i32
    %c0_i32_1 = arith.constant 0 : i32
    return %c0_i32, %c0_i32_0 : i32, i32
  }
  func.func @transform_8(%arg0: i32) -> (i32, i32) {
    %c0_i32 = arith.constant 0 : i32
    %c0_i32_0 = arith.constant 0 : i32
    return %arg0, %c0_i32 : i32, i32
  }
}

</mosaic_0001>

<llo_original>
// kernel: tpu_custom_call.1
$region0: #{tpu_custom_call.1}
  #allocation0 [shape = 'u32[]', space=smem, size = 0x4, offset = 0x4, fixed_abs, tag = 'smem constant byte address 0x4 - core index']
  #allocation1 [shape = 'u32[144,128]{1,0:T(1,128)}', space=vmem, size = 0x12000, scoped, tag = 'internal scratch']
  %s0 = inlined_call_operand.vmem [shape: f32[2], index: 0, kind: input, shape index: {}]
  %s1 = inlined_call_operand.vmem [shape: bf16[64,48], index: 1, kind: input, shape index: {}]
  %s2 = inlined_call_operand.vmem [shape: f32[64,1], index: 2, kind: input, shape index: {}]
  %s3 = inlined_call_operand.vmem [shape: f32[3,256], index: 3, kind: input, shape index: {}]
  %s4 = inlined_call_operand.hbm [shape: bf16[48,256], index: 4, kind: input, shape index: {}]
  %s5 = inlined_call_operand.vmem [shape: f32[1,256], index: 5, kind: input, shape index: {}]
  %s6 = inlined_call_operand.vmem [shape: bf16[256,128], index: 6, kind: input, shape index: {}]
  %s7 = inlined_call_operand.vmem [shape: f32[1,128], index: 7, kind: input, shape index: {}]
  %s8 = inlined_call_operand.hbm [shape: bf16[64,128], index: 8, kind: output, shape index: {}]
  %s9 = sld [smem:[#allocation0]]
  $region73: #{tpu_custom_call.1} parent=0
    _
  %s11 = ssub.s32 1, %s9
  %s12 = scalar_select 0, %s11, %s9
  $region1: #{tpu_custom_call.1} parent=0
    #allocation2 [shape = 'u8[512]{0}', space=smem, size = 0x200, scoped, tag = 'input window, operand 0, single buffered']
    #allocation3 [shape = 's32[2]{0}', space=sflag, size = 0x8, scoped, tag = 'scoped memory for tpu_custom_call.1']
    #allocation4 [shape = 's32[2]{0}', space=sflag, size = 0x8, scoped, tag = 'scoped memory for tpu_custom_call.1']
    #allocation5 [shape = 's32[2]{0}', space=sflag, size = 0x8, scoped, tag = 'scoped memory for tpu_custom_call.1']
    #allocation6 [shape = 'u8[24576]{0}', space=vmem, size = 0x6000, scoped, tag = 'input window, operand 4, single buffered']
    #allocation7 [shape = 'u8[16384]{0}', space=vmem, size = 0x4000, scoped, tag = 'output window, operand 0']
    %13 = vsyncpa [#allocation5], 0
    %14 = vsyncpa [#allocation3], 0
    %15 = vsyncpa [#allocation4], 0
    %s16 = scalar_lea.sflag [#allocation4], 1
    %17 = vsyncpa %s16, 0
    loop: start=0, step=1, limit=4
    $region2: #{tpu_custom_call.1} parent=1 // loop_pre_header
      _
    $region3: #{tpu_custom_call.1} parent=1 // loop_header
      %s19 = sphi 0, %s23
      %p20 = scmp.ge.s32.totalorder %s19, 4
      %s27 = sphi 0, %s27
      %s29 = sphi 0, %s27
      %s30 = sphi 0, %s29
      %s44 = sphi 0, %s30
      %s50 = sphi 0, %s52
      %s53 = sphi 0, %s50
      %s54 = sphi 0, %s53
      %s70 = sphi 0, %s54
      %s76 = sphi 0, %s78
      %s79 = sphi 0, %s76
      %s80 = sphi 0, %s79
      %s96 = sphi 0, %s80
      %s100 = sphi 0, %s100
      %s102 = sphi 0, %s100
      %s103 = sphi 0, %s102
      %s117 = sphi 0, %s103
      %s121 = sphi 0, %s121
      %s123 = sphi 0, %s121
      %s124 = sphi 0, %s123
      %s138 = sphi 0, %s124
      %s142 = sphi 0, %s142
      %s144 = sphi 0, %s142
      %s145 = sphi 0, %s144
      %s159 = sphi 0, %s145
      %s163 = sphi 0, %s163
      %s165 = sphi 0, %s163
      %s166 = sphi 0, %s165
      %s180 = sphi 0, %s166
      %s184 = sphi 0, %s184
      %s186 = sphi 0, %s184
      %s187 = sphi 0, %s186
      %s201 = sphi 0, %s187
      %s207 = sphi 0, %s209
      %s210 = sphi 0, %s207
      %s211 = sphi 0, %s210
      %s227 = sphi 0, %s211
    $region4: #{tpu_custom_call.1} parent=1 // loop_header_branch
      %22 = sbr.rel (%p20) target = $region8
    $region5: #{tpu_custom_call.1} parent=1 // loop_body
      %s24 = ssub.s32 %s19, 1
      %s25 = ssub.s32 %s19, 2
      %s26 = sadd.s32 %s19, 1
      %s28 = sadd.s32 %s27, 1
      %p31 = scmp.eq.s32.totalorder %s19, 1
      %p32 = scmp.ne.s32.totalorder %s27, %s29
      %p33 = scmp.eq.s32.totalorder %s19, 0
      %p34 = por %p32, %p33
      %p35 = scmp.ne.s32.totalorder %s27, %s29
      %p36 = scmp.eq.s32.totalorder %s24, 1
      %p37 = por %p35, %p36
      %p38 = scmp.ne.s32.totalorder %s29, %s30
      %p39 = scmp.eq.s32.totalorder %s24, 0
      %p40 = por %p38, %p39
      %p41 = scmp.ne.s32.totalorder %s29, %s30
      %p42 = scmp.eq.s32.totalorder %s25, 1
      %p43 = por %p41, %p42
      %p45 = scmp.ne.s32.totalorder %s30, %s44
      %p46 = scmp.eq.s32.totalorder %s25, 0
      %p47 = por %p45, %p46
      %s48 = ssub.s32 %s19, %s26
      %p49 = scmp.eq.s32.totalorder %s48, 0
      %s51 = sadd.s32 %s50, 1
      %s52 = scalar_select %p49, %s50, %s51
      %p55 = pneg %p49
      %p56 = scmp.eq.s32.totalorder %s19, 1
      %p57 = por %p55, %p56
      %p58 = scmp.ne.s32.totalorder %s50, %s53
      %p59 = scmp.eq.s32.totalorder %s19, 0
      %p60 = por %p58, %p59
      %p61 = scmp.ne.s32.totalorder %s50, %s53
      %p62 = scmp.eq.s32.totalorder %s24, 1
      %p63 = por %p61, %p62
      %p64 = scmp.ne.s32.totalorder %s53, %s54
      %p65 = scmp.eq.s32.totalorder %s24, 0
      %p66 = por %p64, %p65
      %p67 = scmp.ne.s32.totalorder %s53, %s54
      %p68 = scmp.eq.s32.totalorder %s25, 1
      %p69 = por %p67, %p68
      %p71 = scmp.ne.s32.totalorder %s54, %s70
      %p72 = scmp.eq.s32.totalorder %s25, 0
      %p73 = por %p71, %p72
      %s74 = ssub.s32 %s19, %s26
      %p75 = scmp.eq.s32.totalorder %s74, 0
      %s77 = sadd.s32 %s76, 1
      %s78 = scalar_select %p75, %s76, %s77
      %p81 = pneg %p75
      %p82 = scmp.eq.s32.totalorder %s19, 1
      %p83 = por %p81, %p82
      %p84 = scmp.ne.s32.totalorder %s76, %s79
      %p85 = scmp.eq.s32.totalorder %s19, 0
      %p86 = por %p84, %p85
      %p87 = scmp.ne.s32.totalorder %s76, %s79
      %p88 = scmp.eq.s32.totalorder %s24, 1
      %p89 = por %p87, %p88
      %p90 = scmp.ne.s32.totalorder %s79, %s80
      %p91 = scmp.eq.s32.totalorder %s24, 0
      %p92 = por %p90, %p91
      %p93 = scmp.ne.s32.totalorder %s79, %s80
      %p94 = scmp.eq.s32.totalorder %s25, 1
      %p95 = por %p93, %p94
      %p97 = scmp.ne.s32.totalorder %s80, %s96
      %p98 = scmp.eq.s32.totalorder %s25, 0
      %p99 = por %p97, %p98
      %s101 = sadd.s32 %s100, 1
      %p104 = scmp.eq.s32.totalorder %s19, 1
      %p105 = scmp.ne.s32.totalorder %s100, %s102
      %p106 = scmp.eq.s32.totalorder %s19, 0
      %p107 = por %p105, %p106
      %p108 = scmp.ne.s32.totalorder %s100, %s102
      %p109 = scmp.eq.s32.totalorder %s24, 1
      %p110 = por %p108, %p109
      %p111 = scmp.ne.s32.totalorder %s102, %s103
      %p112 = scmp.eq.s32.totalorder %s24, 0
      %p113 = por %p111, %p112
      %p114 = scmp.ne.s32.totalorder %s102, %s103
      %p115 = scmp.eq.s32.totalorder %s25, 1
      %p116 = por %p114, %p115
      %p118 = scmp.ne.s32.totalorder %s103, %s117
      %p119 = scmp.eq.s32.totalorder %s25, 0
      %p120 = por %p118, %p119
      %s122 = sadd.s32 %s121, 1
      %p125 = scmp.eq.s32.totalorder %s19, 1
      %p126 = scmp.ne.s32.totalorder %s121, %s123
      %p127 = scmp.eq.s32.totalorder %s19, 0
      %p128 = por %p126, %p127
      %p129 = scmp.ne.s32.totalorder %s121, %s123
      %p130 = scmp.eq.s32.totalorder %s24, 1
      %p131 = por %p129, %p130
      %p132 = scmp.ne.s32.totalorder %s123, %s124
      %p133 = scmp.eq.s32.totalorder %s24, 0
      %p134 = por %p132, %p133
      %p135 = scmp.ne.s32.totalorder %s123, %s124
      %p136 = scmp.eq.s32.totalorder %s25, 1
      %p137 = por %p135, %p136
      %p139 = scmp.ne.s32.totalorder %s124, %s138
      %p140 = scmp.eq.s32.totalorder %s25, 0
      %p141 = por %p139, %p140
      %s143 = sadd.s32 %s142, 1
      %p146 = scmp.eq.s32.totalorder %s19, 1
      %p147 = scmp.ne.s32.totalorder %s142, %s144
      %p148 = scmp.eq.s32.totalorder %s19, 0
      %p149 = por %p147, %p148
      %p150 = scmp.ne.s32.totalorder %s142, %s144
      %p151 = scmp.eq.s32.totalorder %s24, 1
      %p152 = por %p150, %p151
      %p153 = scmp.ne.s32.totalorder %s144, %s145
      %p154 = scmp.eq.s32.totalorder %s24, 0
      %p155 = por %p153, %p154
      %p156 = scmp.ne.s32.totalorder %s144, %s145
      %p157 = scmp.eq.s32.totalorder %s25, 1
      %p158 = por %p156, %p157
      %p160 = scmp.ne.s32.totalorder %s145, %s159
      %p161 = scmp.eq.s32.totalorder %s25, 0
      %p162 = por %p160, %p161
      %s164 = sadd.s32 %s163, 1
      %p167 = scmp.eq.s32.totalorder %s19, 1
      %p168 = scmp.ne.s32.totalorder %s163, %s165
      %p169 = scmp.eq.s32.totalorder %s19, 0
      %p170 = por %p168, %p169
      %p171 = scmp.ne.s32.totalorder %s163, %s165
      %p172 = scmp.eq.s32.totalorder %s24, 1
      %p173 = por %p171, %p172
      %p174 = scmp.ne.s32.totalorder %s165, %s166
      %p175 = scmp.eq.s32.totalorder %s24, 0
      %p176 = por %p174, %p175
      %p177 = scmp.ne.s32.totalorder %s165, %s166
      %p178 = scmp.eq.s32.totalorder %s25, 1
      %p179 = por %p177, %p178
      %p181 = scmp.ne.s32.totalorder %s166, %s180
      %p182 = scmp.eq.s32.totalorder %s25, 0
      %p183 = por %p181, %p182
      %s185 = sadd.s32 %s184, 1
      %p188 = scmp.eq.s32.totalorder %s19, 1
      %p189 = scmp.ne.s32.totalorder %s184, %s186
      %p190 = scmp.eq.s32.totalorder %s19, 0
      %p191 = por %p189, %p190
      %p192 = scmp.ne.s32.totalorder %s184, %s186
      %p193 = scmp.eq.s32.totalorder %s24, 1
      %p194 = por %p192, %p193
      %p195 = scmp.ne.s32.totalorder %s186, %s187
      %p196 = scmp.eq.s32.totalorder %s24, 0
      %p197 = por %p195, %p196
      %p198 = scmp.ne.s32.totalorder %s186, %s187
      %p199 = scmp.eq.s32.totalorder %s25, 1
      %p200 = por %p198, %p199
      %p202 = scmp.ne.s32.totalorder %s187, %s201
      %p203 = scmp.eq.s32.totalorder %s25, 0
      %p204 = por %p202, %p203
      %s205 = ssub.s32 %s19, %s26
      %p206 = scmp.eq.s32.totalorder %s205, 0
      %s208 = sadd.s32 %s207, 1
      %s209 = scalar_select %p206, %s207, %s208
      %p212 = pneg %p206
      %p213 = scmp.eq.s32.totalorder %s19, 1
      %p214 = por %p212, %p213
      %p215 = scmp.ne.s32.totalorder %s207, %s210
      %p216 = scmp.eq.s32.totalorder %s19, 0
      %p217 = por %p215, %p216
      %p218 = scmp.ne.s32.totalorder %s207, %s210
      %p219 = scmp.eq.s32.totalorder %s24, 1
      %p220 = por %p218, %p219
      %p221 = scmp.ne.s32.totalorder %s210, %s211
      %p222 = scmp.eq.s32.totalorder %s24, 0
      %p223 = por %p221, %p222
      %p224 = scmp.ne.s32.totalorder %s210, %s211
      %p225 = scmp.eq.s32.totalorder %s25, 1
      %p226 = por %p224, %p225
      %p228 = scmp.ne.s32.totalorder %s211, %s227
      %p229 = scmp.eq.s32.totalorder %s25, 0
      %p230 = por %p228, %p229
      %p231 = scmp.le.s32.totalorder 1, %s19
      %p232 = scmp.lt.s32.totalorder %s19, 3
      %p233 = pnand %p231, %p232
      %p234 = pneg %p233
      // Predicated region
      $region9: #{tpu_custom_call.1} parent=5 // pred_check
        _
      $region10: #{tpu_custom_call.1} parent=5 // pred_check_branch
        %236 = sbr.rel (%p233) target = $region12
      $region11: #{tpu_custom_call.1} parent=5 // pred_region
        %s237 = ssub.s32 %s19, 1
        // Predicated region
        $region13: #{tpu_custom_call.1} parent=11 // pred_check
          %p238 = pneg %p40
        $region14: #{tpu_custom_call.1} parent=11 // pred_check_branch
          %240 = sbr.rel (%p238) target = $region16
        $region15: #{tpu_custom_call.1} parent=11 // pred_region
          %s242 = ssub.s32 16, 16
          %243 = vsyncadd [#allocation5], %s242
          %s245 = sshll.u32 %s0, 4
          %s246 = int_to_ptr.vmem [resolvable:$true] %s245
          %248 = dma.vmem_to_smem %s246, 16, [#allocation2], [#allocation5]
        $region16: #{tpu_custom_call.1} parent=11 // pred_fallthru
          _
        // Predicated region
        $region17: #{tpu_custom_call.1} parent=11 // pred_check
          %p249 = pneg %p113
        $region18: #{tpu_custom_call.1} parent=11 // pred_check_branch
          %251 = sbr.rel (%p249) target = $region20
        $region19: #{tpu_custom_call.1} parent=11 // pred_region
          _
        $region20: #{tpu_custom_call.1} parent=11 // pred_fallthru
          _
        // Predicated region
        $region21: #{tpu_custom_call.1} parent=11 // pred_check
          %p252 = pneg %p134
        $region22: #{tpu_custom_call.1} parent=11 // pred_check_branch
          %254 = sbr.rel (%p252) target = $region24
        $region23: #{tpu_custom_call.1} parent=11 // pred_region
          %s256 = ssub.s32 768, 768
          %257 = vsyncadd [#allocation3], %s256
          %s258 = sshll.u32 [#allocation6], 4
          %s259 = int_to_ptr.vmem [resolvable:$true] %s258
          %264 = dma.hbm_to_vmem [thread:$0]  %s4, 768, %s259, [#allocation3], 128, 128, 8
        $region24: #{tpu_custom_call.1} parent=11 // pred_fallthru
          _
        // Predicated region
        $region25: #{tpu_custom_call.1} parent=11 // pred_check
          %p265 = pneg %p155
        $region26: #{tpu_custom_call.1} parent=11 // pred_check_branch
          %267 = sbr.rel (%p265) target = $region28
        $region27: #{tpu_custom_call.1} parent=11 // pred_region
          _
        $region28: #{tpu_custom_call.1} parent=11 // pred_fallthru
          _
        // Predicated region
        $region29: #{tpu_custom_call.1} parent=11 // pred_check
          %p268 = pneg %p176
        $region30: #{tpu_custom_call.1} parent=11 // pred_check_branch
          %270 = sbr.rel (%p268) target = $region32
        $region31: #{tpu_custom_call.1} parent=11 // pred_region
          _
        $region32: #{tpu_custom_call.1} parent=11 // pred_fallthru
          _
        // Predicated region
        $region33: #{tpu_custom_call.1} parent=11 // pred_check
          %p271 = pneg %p197
        $region34: #{tpu_custom_call.1} parent=11 // pred_check_branch
          %273 = sbr.rel (%p271) target = $region36
        $region35: #{tpu_custom_call.1} parent=11 // pred_region
          _
        $region36: #{tpu_custom_call.1} parent=11 // pred_fallthru
          _
      $region12: #{tpu_custom_call.1} parent=5 // pred_fallthru
        _
      %p274 = scmp.lt.s32.totalorder %s19, 2
      // Predicated region
      $region37: #{tpu_custom_call.1} parent=5 // pred_check
        %p275 = pneg %p274
      $region38: #{tpu_custom_call.1} parent=5 // pred_check_branch
        %277 = sbr.rel (%p275) target = $region40
      $region39: #{tpu_custom_call.1} parent=5 // pred_region
        // Predicated region
        $region41: #{tpu_custom_call.1} parent=39 // pred_check
          %p278 = pneg %p60
        $region42: #{tpu_custom_call.1} parent=39 // pred_check_branch
          %280 = sbr.rel (%p278) target = $region44
        $region43: #{tpu_custom_call.1} parent=39 // pred_region
          %s281 = smul.u32 4, %s19
          %p282 = scmp.lt.s32.totalorder %s281, 7
          %s283 = scalar_select %p282, %s281, 7
          %s284 = smul.addr %s283, 4
          %s285 = scalar_lea.vmem %s1, %s284
          %s286 = smul.u32 4, %s19
        $region44: #{tpu_custom_call.1} parent=39 // pred_fallthru
          _
        // Predicated region
        $region45: #{tpu_custom_call.1} parent=39 // pred_check
          %p287 = pneg %p86
        $region46: #{tpu_custom_call.1} parent=39 // pred_check_branch
          %289 = sbr.rel (%p287) target = $region48
        $region47: #{tpu_custom_call.1} parent=39 // pred_region
          %s290 = smul.u32 4, %s19
          %p291 = scmp.lt.s32.totalorder %s290, 7
          %s292 = scalar_select %p291, %s290, 7
          %s293 = smul.addr %s292, 8
          %s294 = scalar_lea.vmem %s2, %s293
          %s295 = smul.u32 4, %s19
        $region48: #{tpu_custom_call.1} parent=39 // pred_fallthru
          _
      $region40: #{tpu_custom_call.1} parent=5 // pred_fallthru
        _
      %p296 = scmp.le.s32.totalorder 1, %s19
      %p297 = scmp.lt.s32.totalorder %s19, 3
      %p298 = pnand %p296, %p297
      %p299 = pneg %p298
      // Predicated region
      $region49: #{tpu_custom_call.1} parent=5 // pred_check
        _
      $region50: #{tpu_custom_call.1} parent=5 // pred_check_branch
        %301 = sbr.rel (%p298) target = $region52
      $region51: #{tpu_custom_call.1} parent=5 // pred_region
        %s302 = ssub.s32 %s19, 1
        // Predicated region
        $region53: #{tpu_custom_call.1} parent=51 // pred_check
          %p303 = pneg %p40
        $region54: #{tpu_custom_call.1} parent=51 // pred_check_branch
          %305 = sbr.rel (%p303) target = $region56
        $region55: #{tpu_custom_call.1} parent=51 // pred_region
          %306 = dma.done [#allocation5], 16
        $region56: #{tpu_custom_call.1} parent=51 // pred_fallthru
          _
        // Predicated region
        $region57: #{tpu_custom_call.1} parent=51 // pred_check
          %p307 = pneg %p134
        $region58: #{tpu_custom_call.1} parent=51 // pred_check_branch
          %309 = sbr.rel (%p307) target = $region60
        $region59: #{tpu_custom_call.1} parent=51 // pred_region
          %310 = dma.done [#allocation3], 768
        $region60: #{tpu_custom_call.1} parent=51 // pred_fallthru
          _
        %311 = sfence
        %p312 = pneg %p40
        %p313 = pneg %p37
        %s314 = smul.u32 4, %s24
        %p315 = scmp.lt.s32.totalorder %s314, 7
        %s316 = scalar_select %p315, %s314, 7
        %s317 = smul.addr %s316, 4
        %s318 = scalar_lea.vmem %s1, %s317
        %p319 = pneg %p66
        %p320 = pneg %p63
        %s321 = smul.u32 4, %s24
        %p322 = scmp.lt.s32.totalorder %s321, 7
        %s323 = scalar_select %p322, %s321, 7
        %s324 = smul.addr %s323, 8
        %s325 = scalar_lea.vmem %s2, %s324
        %p326 = pneg %p92
        %p327 = pneg %p89
        %p328 = pneg %p113
        %p329 = pneg %p110
        %p330 = pneg %p134
        %p331 = pneg %p131
        %p332 = pneg %p155
        %p333 = pneg %p152
        %p334 = pneg %p176
        %p335 = pneg %p173
        %p336 = pneg %p197
        %p337 = pneg %p194
        %p338 = pneg %p223
        %p339 = pneg %p220
        %s340 = sand.u32 %s210, 1
        %s341 = scalar_lea.sflag [#allocation4], %s340
        %s342 = sand.u32 %s210, 1
        %s343 = smul.addr %s342, 16
        %s344 = scalar_lea.vmem [#allocation7], %s343
        %s345 = smul.u32 4, %s24
        %p346 = scmp.lt.s32.totalorder %s345, 7
        %s347 = scalar_select %p346, %s345, 7
        %s348 = smul.addr %s347, 4
        %s349 = scalar_lea.vmem %s1, %s348
        %s350 = smul.u32 4, %s24
        %s351 = smul.u32 4, %s24
        %p352 = scmp.lt.s32.totalorder %s351, 7
        %s353 = scalar_select %p352, %s351, 7
        %s354 = smul.addr %s353, 8
        %s355 = scalar_lea.vmem %s2, %s354
        %s356 = smul.u32 4, %s24
        %s357 = smul.u32 4, %s24
        %v359 = vld [vmem:[%s355] sm:$0xff]
        %v360 = vld [vmem:[%s355 + $0x8] sm:$0xff]
        %v361 = vld [vmem:[%s355 + $0x10] sm:$0xff]
        %v362 = vld [vmem:[%s355 + $0x18] sm:$0xff]
        %s363 = sld [smem:[#allocation2]]
        %s364 = sld [smem:[#allocation2 + $0x1]]
        %v365 = vstv %s363
        %vm366 = vcmp.le.f32.partialorder %v359, %v365
        %vm367 = vcmp.le.f32.partialorder %v360, %v365
        %vm368 = vcmp.le.f32.partialorder %v361, %v365
        %vm369 = vcmp.le.f32.partialorder %v362, %v365
        %v370 = vsel %vm366, 1, 0
        %v371 = vsel %vm367, 1, 0
        %v372 = vsel %vm368, 1, 0
        %v373 = vsel %vm369, 1, 0
        %v374 = vcvt.s32.f32 %v370
        %v375 = vcvt.s32.f32 %v371
        %v376 = vcvt.s32.f32 %v372
        %v377 = vcvt.s32.f32 %v373
        %v378 = vstv %s364
        %vm379 = vcmp.gt.f32.partialorder %v359, %v378
        %vm380 = vcmp.gt.f32.partialorder %v360, %v378
        %vm381 = vcmp.gt.f32.partialorder %v361, %v378
        %vm382 = vcmp.gt.f32.partialorder %v362, %v378
        %v383 = vsel %vm379, 1, 0
        %v384 = vsel %vm380, 1, 0
        %v385 = vsel %vm381, 1, 0
        %v386 = vsel %vm382, 1, 0
        %v387 = vcvt.s32.f32 %v383
        %v388 = vcvt.s32.f32 %v384
        %v389 = vcvt.s32.f32 %v385
        %v390 = vcvt.s32.f32 %v386
        %v391 = vsub.f32 1.0, %v374
        %v392 = vsub.f32 1.0, %v375
        %v393 = vsub.f32 1.0, %v376
        %v394 = vsub.f32 1.0, %v377
        %v395 = vsub.f32 %v391, %v387
        %v396 = vsub.f32 %v392, %v388
        %v397 = vsub.f32 %v393, %v389
        %v398 = vsub.f32 %v394, %v390
        %v399 = vld [vmem:[%s3] ss:$4 sm:$0x3]
        %401 = vset.pattern.permute.xlu0 0
        %402 = vperm.xlu0 %401, %v374
        %v403 = vpop.permute.xlu0 %402
        %406 = vset.pattern.permute.xlu0 0
        %407 = vperm.xlu0 %406, %v375
        %v408 = vpop.permute.xlu0 %407
        %411 = vset.pattern.permute.xlu0 0
        %412 = vperm.xlu0 %411, %v376
        %v413 = vpop.permute.xlu0 %412
        %416 = vset.pattern.permute.xlu0 0
        %417 = vperm.xlu0 %416, %v377
        %v418 = vpop.permute.xlu0 %417
        %v421 = vlaneseq
        %v422 = vshrl.u32 %v421, 7
        %v423 = vsub.s32 0, %v422
        %v424 = vrot.slane %v399, %v423
        %v425 = vlaneseq
        %v426 = vshrl.u32 %v425, 7
        %v427 = vsub.s32 1, %v426
        %v428 = vrot.slane %v399, %v427
        %v431 = vmul.f32 %v403, %v424
        %v432 = vmul.f32 %v403, %v428
        %v433 = vmul.f32 %v408, %v424
        %v434 = vmul.f32 %v408, %v428
        %v435 = vmul.f32 %v413, %v424
        %v436 = vmul.f32 %v413, %v428
        %v437 = vmul.f32 %v418, %v424
        %v438 = vmul.f32 %v418, %v428
        %s439 = scalar_lea.vmem %s3, 1
        %v440 = vld [vmem:[%s439] ss:$4 sm:$0x3]
        %442 = vset.pattern.permute.xlu0 0
        %443 = vperm.xlu0 %442, %v395
        %v444 = vpop.permute.xlu0 %443
        %447 = vset.pattern.permute.xlu0 0
        %448 = vperm.xlu0 %447, %v396
        %v449 = vpop.permute.xlu0 %448
        %452 = vset.pattern.permute.xlu0 0
        %453 = vperm.xlu0 %452, %v397
        %v454 = vpop.permute.xlu0 %453
        %457 = vset.pattern.permute.xlu0 0
        %458 = vperm.xlu0 %457, %v398
        %v459 = vpop.permute.xlu0 %458
        %v462 = vlaneseq
        %v463 = vshrl.u32 %v462, 7
        %v464 = vsub.s32 0, %v463
        %v465 = vrot.slane %v440, %v464
        %v466 = vlaneseq
        %v467 = vshrl.u32 %v466, 7
        %v468 = vsub.s32 1, %v467
        %v469 = vrot.slane %v440, %v468
        %v472 = vmul.f32 %v444, %v465
        %v473 = vmul.f32 %v444, %v469
        %v474 = vmul.f32 %v449, %v465
        %v475 = vmul.f32 %v449, %v469
        %v476 = vmul.f32 %v454, %v465
        %v477 = vmul.f32 %v454, %v469
        %v478 = vmul.f32 %v459, %v465
        %v479 = vmul.f32 %v459, %v469
        %v480 = vadd.f32 %v431, %v472
        %v481 = vadd.f32 %v432, %v473
        %v482 = vadd.f32 %v433, %v474
        %v483 = vadd.f32 %v434, %v475
        %v484 = vadd.f32 %v435, %v476
        %v485 = vadd.f32 %v436, %v477
        %v486 = vadd.f32 %v437, %v478
        %v487 = vadd.f32 %v438, %v479
        %s488 = scalar_lea.vmem %s3, 2
        %v489 = vld [vmem:[%s488] ss:$4 sm:$0x3]
        %491 = vset.pattern.permute.xlu0 0
        %492 = vperm.xlu0 %491, %v387
        %v493 = vpop.permute.xlu0 %492
        %496 = vset.pattern.permute.xlu0 0
        %497 = vperm.xlu0 %496, %v388
        %v498 = vpop.permute.xlu0 %497
        %501 = vset.pattern.permute.xlu0 0
        %502 = vperm.xlu0 %501, %v389
        %v503 = vpop.permute.xlu0 %502
        %506 = vset.pattern.permute.xlu0 0
        %507 = vperm.xlu0 %506, %v390
        %v508 = vpop.permute.xlu0 %507
        %v511 = vlaneseq
        %v512 = vshrl.u32 %v511, 7
        %v513 = vsub.s32 0, %v512
        %v514 = vrot.slane %v489, %v513
        %v515 = vlaneseq
        %v516 = vshrl.u32 %v515, 7
        %v517 = vsub.s32 1, %v516
        %v518 = vrot.slane %v489, %v517
        %v521 = vmul.f32 %v493, %v514
        %v522 = vmul.f32 %v493, %v518
        %v523 = vmul.f32 %v498, %v514
        %v524 = vmul.f32 %v498, %v518
        %v525 = vmul.f32 %v503, %v514
        %v526 = vmul.f32 %v503, %v518
        %v527 = vmul.f32 %v508, %v514
        %v528 = vmul.f32 %v508, %v518
        %v529 = vadd.f32 %v480, %v521
        %v530 = vadd.f32 %v481, %v522
        %v531 = vadd.f32 %v482, %v523
        %v532 = vadd.f32 %v483, %v524
        %v533 = vadd.f32 %v484, %v525
        %v534 = vadd.f32 %v485, %v526
        %v535 = vadd.f32 %v486, %v527
        %v536 = vadd.f32 %v487, %v528
        %v537 = vld [vmem:[%s349] sm:$0xf]
        %v538 = vld [vmem:[%s349 + $0x4] sm:$0xf]
        %v539 = vld [vmem:[%s349 + $0x8] sm:$0xf]
        %v540 = vld [vmem:[%s349 + $0xc] sm:$0xf]
        %v541 = vld [vmem:[#allocation6] sm:$0xff]
        %v542 = vld [vmem:[#allocation6 + $0x8] sm:$0xff]
        %v543 = vld [vmem:[#allocation6 + $0x10] sm:$0xff]
        %v544 = vld [vmem:[#allocation6 + $0x18] sm:$0xff]
        %v545 = vld [vmem:[#allocation6 + $0x20] sm:$0xff]
        %v546 = vld [vmem:[#allocation6 + $0x28] sm:$0xff]
        %v551 = vunpack.c.l.b16 %v537
        %v552 = vunpack.c.l.b16 %v538
        %v553 = vunpack.c.l.b16 %v539
        %v554 = vunpack.c.l.b16 %v540
        %v555 = vpack.c.b16 %v552, %v551
        %v556 = vpack.c.b16 %v554, %v553
        %v563 = vunpack.c.l.b16 %v541
        %v564 = vunpack.c.h.b16 %v541
        %v565 = vunpack.c.l.b16 %v542
        %v566 = vunpack.c.h.b16 %v542
        %v567 = vunpack.c.l.b16 %v543
        %v568 = vunpack.c.h.b16 %v543
        %v569 = vunpack.c.l.b16 %v544
        %v570 = vunpack.c.h.b16 %v544
        %v571 = vunpack.c.l.b16 %v545
        %v572 = vunpack.c.h.b16 %v545
        %v573 = vunpack.c.l.b16 %v546
        %v574 = vunpack.c.h.b16 %v546
        %v575 = vpack.c.b16 %v565, %v563
        %v576 = vpack.c.b16 %v566, %v564
        %v577 = vpack.c.b16 %v569, %v567
        %v578 = vpack.c.b16 %v570, %v568
        %v579 = vpack.c.b16 %v573, %v571
        %v580 = vpack.c.b16 %v574, %v572
        %vm587 = vcmask 392192
        %v589 = vsel %vm587, %v555, 0
        %v592 = vsel %vm587, %v556, 0
        %594 = vmatprep.subr.bf16.mxu0 %v576
        %595 = vmatpush1.bf16.msra.mxu0 %v575
        %596 = vmatprep.subr.bf16.mxu0 %v578
        %597 = vmatpush1.bf16.msra.mxu0 %v577
        %598 = vmatprep.subr.bf16.mxu0 %v580
        %599 = vmatpush1.bf16.msra.mxu0 %v579
        %600 = vmatprep.subr.bf16.mxu0 0
        %601 = vmatpush1.bf16.msra.mxu0 0
        %602 = vmatprep.subr.bf16.mxu0 0
        %603 = vmatpush1.bf16.msra.mxu0 0
        %604 = vmatprep.subr.bf16.mxu0 0
        %605 = vmatpush1.bf16.msra.mxu0 0
        %606 = vmatprep.subr.bf16.mxu0 0
        %607 = vmatpush1.bf16.msra.mxu0 0
        %608 = vmatprep.subr.bf16.mxu0 0
        %609 = vmatpush1.bf16.msra.mxu0 0
        %610 = vmatprep.subr.bf16.mxu0 0
        %611 = vmatpush1.bf16.msra.mxu0 0
        %612 = vmatprep.subr.bf16.mxu0 0
        %613 = vmatpush1.bf16.msra.mxu0 0
        %614 = vmatprep.subr.bf16.mxu0 0
        %615 = vmatpush1.bf16.msra.mxu0 0
        %616 = vmatprep.subr.bf16.mxu0 0
        %617 = vmatpush1.bf16.msra.mxu0 0
        %618 = vmatprep.subr.bf16.mxu0 0
        %619 = vmatpush1.bf16.msra.mxu0 0
        %620 = vmatprep.subr.bf16.mxu0 0
        %621 = vmatpush1.bf16.msra.mxu0 0
        %622 = vmatprep.subr.bf16.mxu0 0
        %623 = vmatpush1.bf16.msra.mxu0 0
        %624 = vmatprep.subr.bf16.mxu0 0
        %625 = vmatpush1.bf16.msra.mxu0 0
        %626 = vmatprep.mubr.bf16.mxu0 0
        %627 = vmatmul.mubr.bf16.gmra.mrb[0].mxu0 %v589
        %v628 = vpop.f32.mrb[0].mxu0
        %v629 = vadd.f32 0.0, %v628
        %v630 = vpop.f32.mrb[0].mxu0
        %v631 = vadd.f32 0.0, %v630
        %v632 = vpop.f32.mrb[0].mxu0
        %v633 = vadd.f32 0.0, %v632
        %v634 = vpop.f32.mrb[0].mxu0
        %v635 = vadd.f32 0.0, %v634
        %636 = vmatprep.mubr.bf16.mxu0 0
        %637 = vmatmul.mubr.bf16.gmra.mrb[0].mxu0 %v592
        %v638 = vpop.f32.mrb[0].mxu0
        %v639 = vadd.f32 0.0, %v638
        %v640 = vpop.f32.mrb[0].mxu0
        %v641 = vadd.f32 0.0, %v640
        %v642 = vpop.f32.mrb[0].mxu0
        %v643 = vadd.f32 0.0, %v642
        %v644 = vpop.f32.mrb[0].mxu0
        %v645 = vadd.f32 0.0, %v644
        %646 = vdwg.mxu0
        %v647 = vmul.f32 %v529, %v629
        %v648 = vmul.f32 %v530, %v631
        %v649 = vmul.f32 %v531, %v633
        %v650 = vmul.f32 %v532, %v635
        %v651 = vmul.f32 %v533, %v639
        %v652 = vmul.f32 %v534, %v641
        %v653 = vmul.f32 %v535, %v643
        %v654 = vmul.f32 %v536, %v645
        %v655 = vld [vmem:[%s5] sm:$0x3]
        %v657 = vlaneseq
        %v658 = vshrl.u32 %v657, 7
        %v659 = vsub.s32 0, %v658
        %v660 = vrot.slane %v655, %v659
        %v661 = vlaneseq
        %v662 = vshrl.u32 %v661, 7
        %v663 = vsub.s32 1, %v662
        %v664 = vrot.slane %v655, %v663
        %v667 = vadd.f32 %v647, %v660
        %v668 = vadd.f32 %v648, %v664
        %v669 = vadd.f32 %v649, %v660
        %v670 = vadd.f32 %v650, %v664
        %v671 = vadd.f32 %v651, %v660
        %v672 = vadd.f32 %v652, %v664
        %v673 = vadd.f32 %v653, %v660
        %v674 = vadd.f32 %v654, %v664
        %v675 = vmax.f32 %v667, 0.0
        %v676 = vmax.f32 %v668, 0.0
        %v677 = vmax.f32 %v669, 0.0
        %v678 = vmax.f32 %v670, 0.0
        %v679 = vmax.f32 %v671, 0.0
        %v680 = vmax.f32 %v672, 0.0
        %v681 = vmax.f32 %v673, 0.0
        %v682 = vmax.f32 %v674, 0.0
        %vm683 = vcmp.gt.f32.partialorder %v675, 0.01
        %vm684 = vcmp.gt.f32.partialorder %v676, 0.01
        %vm685 = vcmp.gt.f32.partialorder %v677, 0.01
        %vm686 = vcmp.gt.f32.partialorder %v678, 0.01
        %vm687 = vcmp.gt.f32.partialorder %v679, 0.01
        %vm688 = vcmp.gt.f32.partialorder %v680, 0.01
        %vm689 = vcmp.gt.f32.partialorder %v681, 0.01
        %vm690 = vcmp.gt.f32.partialorder %v682, 0.01
        %v691 = vsub.f32 %v675, 0.01
        %v692 = vsub.f32 %v676, 0.01
        %v693 = vsub.f32 %v677, 0.01
        %v694 = vsub.f32 %v678, 0.01
        %v695 = vsub.f32 %v679, 0.01
        %v696 = vsub.f32 %v680, 0.01
        %v697 = vsub.f32 %v681, 0.01
        %v698 = vsub.f32 %v682, 0.01
        %v699 = vsel %vm683, %v691, 0.0
        %v700 = vsel %vm684, %v692, 0.0
        %v701 = vsel %vm685, %v693, 0.0
        %v702 = vsel %vm686, %v694, 0.0
        %v703 = vsel %vm687, %v695, 0.0
        %v704 = vsel %vm688, %v696, 0.0
        %v705 = vsel %vm689, %v697, 0.0
        %v706 = vsel %vm690, %v698, 0.0
        %v707 = vpack.c.bf16 %v701, %v699
        %v708 = vpack.c.bf16 %v702, %v700
        %v709 = vpack.c.bf16 %v705, %v703
        %v710 = vpack.c.bf16 %v706, %v704
        %v711 = vld [vmem:[%s6] sm:$0xf]
        %v712 = vld [vmem:[%s6 + $0x4] sm:$0xf]
        %v713 = vld [vmem:[%s6 + $0x8] sm:$0xf]
        %v714 = vld [vmem:[%s6 + $0xc] sm:$0xf]
        %v715 = vld [vmem:[%s6 + $0x10] sm:$0xf]
        %v716 = vld [vmem:[%s6 + $0x14] sm:$0xf]
        %v717 = vld [vmem:[%s6 + $0x18] sm:$0xf]
        %v718 = vld [vmem:[%s6 + $0x1c] sm:$0xf]
        %v719 = vld [vmem:[%s6 + $0x20] sm:$0xf]
        %v720 = vld [vmem:[%s6 + $0x24] sm:$0xf]
        %v721 = vld [vmem:[%s6 + $0x28] sm:$0xf]
        %v722 = vld [vmem:[%s6 + $0x2c] sm:$0xf]
        %v723 = vld [vmem:[%s6 + $0x30] sm:$0xf]
        %v724 = vld [vmem:[%s6 + $0x34] sm:$0xf]
        %v725 = vld [vmem:[%s6 + $0x38] sm:$0xf]
        %v726 = vld [vmem:[%s6 + $0x3c] sm:$0xf]
        %v727 = vld [vmem:[%s6 + $0x40] sm:$0xf]
        %v728 = vld [vmem:[%s6 + $0x44] sm:$0xf]
        %v729 = vld [vmem:[%s6 + $0x48] sm:$0xf]
        %v730 = vld [vmem:[%s6 + $0x4c] sm:$0xf]
        %v731 = vld [vmem:[%s6 + $0x50] sm:$0xf]
        %v732 = vld [vmem:[%s6 + $0x54] sm:$0xf]
        %v733 = vld [vmem:[%s6 + $0x58] sm:$0xf]
        %v734 = vld [vmem:[%s6 + $0x5c] sm:$0xf]
        %v735 = vld [vmem:[%s6 + $0x60] sm:$0xf]
        %v736 = vld [vmem:[%s6 + $0x64] sm:$0xf]
        %v737 = vld [vmem:[%s6 + $0x68] sm:$0xf]
        %v738 = vld [vmem:[%s6 + $0x6c] sm:$0xf]
        %v739 = vld [vmem:[%s6 + $0x70] sm:$0xf]
        %v740 = vld [vmem:[%s6 + $0x74] sm:$0xf]
        %v741 = vld [vmem:[%s6 + $0x78] sm:$0xf]
        %v742 = vld [vmem:[%s6 + $0x7c] sm:$0xf]
        %v743 = vld [vmem:[%s7] sm:$0x1]
        %v745 = vlaneseq
        %v746 = vshrl.u32 %v745, 7
        %v747 = vsub.s32 0, %v746
        %v748 = vrot.slane %v743, %v747
        %v782 = vunpack.c.l.b16 %v711
        %v783 = vunpack.c.l.b16 %v712
        %v784 = vunpack.c.l.b16 %v713
        %v785 = vunpack.c.l.b16 %v714
        %v786 = vunpack.c.l.b16 %v715
        %v787 = vunpack.c.l.b16 %v716
        %v788 = vunpack.c.l.b16 %v717
        %v789 = vunpack.c.l.b16 %v718
        %v790 = vunpack.c.l.b16 %v719
        %v791 = vunpack.c.l.b16 %v720
        %v792 = vunpack.c.l.b16 %v721
        %v793 = vunpack.c.l.b16 %v722
        %v794 = vunpack.c.l.b16 %v723
        %v795 = vunpack.c.l.b16 %v724
        %v796 = vunpack.c.l.b16 %v725
        %v797 = vunpack.c.l.b16 %v726
        %v798 = vunpack.c.l.b16 %v727
        %v799 = vunpack.c.l.b16 %v728
        %v800 = vunpack.c.l.b16 %v729
        %v801 = vunpack.c.l.b16 %v730
        %v802 = vunpack.c.l.b16 %v731
        %v803 = vunpack.c.l.b16 %v732
        %v804 = vunpack.c.l.b16 %v733
        %v805 = vunpack.c.l.b16 %v734
        %v806 = vunpack.c.l.b16 %v735
        %v807 = vunpack.c.l.b16 %v736
        %v808 = vunpack.c.l.b16 %v737
        %v809 = vunpack.c.l.b16 %v738
        %v810 = vunpack.c.l.b16 %v739
        %v811 = vunpack.c.l.b16 %v740
        %v812 = vunpack.c.l.b16 %v741
        %v813 = vunpack.c.l.b16 %v742
        %v814 = vpack.c.b16 %v783, %v782
        %v815 = vpack.c.b16 %v785, %v784
        %v816 = vpack.c.b16 %v787, %v786
        %v817 = vpack.c.b16 %v789, %v788
        %v818 = vpack.c.b16 %v791, %v790
        %v819 = vpack.c.b16 %v793, %v792
        %v820 = vpack.c.b16 %v795, %v794
        %v821 = vpack.c.b16 %v797, %v796
        %v822 = vpack.c.b16 %v799, %v798
        %v823 = vpack.c.b16 %v801, %v800
        %v824 = vpack.c.b16 %v803, %v802
        %v825 = vpack.c.b16 %v805, %v804
        %v826 = vpack.c.b16 %v807, %v806
        %v827 = vpack.c.b16 %v809, %v808
        %v828 = vpack.c.b16 %v811, %v810
        %v829 = vpack.c.b16 %v813, %v812
        %846 = vmatprep.subr.bf16.mxu0 0
        %847 = vmatpush1.bf16.msra.mxu0 %v814
        %848 = vmatprep.subr.bf16.mxu0 0
        %849 = vmatpush1.bf16.msra.mxu0 %v815
        %850 = vmatprep.subr.bf16.mxu0 0
        %851 = vmatpush1.bf16.msra.mxu0 %v816
        %852 = vmatprep.subr.bf16.mxu0 0
        %853 = vmatpush1.bf16.msra.mxu0 %v817
        %854 = vmatprep.subr.bf16.mxu0 0
        %855 = vmatpush1.bf16.msra.mxu0 %v818
        %856 = vmatprep.subr.bf16.mxu0 0
        %857 = vmatpush1.bf16.msra.mxu0 %v819
        %858 = vmatprep.subr.bf16.mxu0 0
        %859 = vmatpush1.bf16.msra.mxu0 %v820
        %860 = vmatprep.subr.bf16.mxu0 0
        %861 = vmatpush1.bf16.msra.mxu0 %v821
        %862 = vmatprep.subr.bf16.mxu0 0
        %863 = vmatpush1.bf16.msra.mxu0 %v822
        %864 = vmatprep.subr.bf16.mxu0 0
        %865 = vmatpush1.bf16.msra.mxu0 %v823
        %866 = vmatprep.subr.bf16.mxu0 0
        %867 = vmatpush1.bf16.msra.mxu0 %v824
        %868 = vmatprep.subr.bf16.mxu0 0
        %869 = vmatpush1.bf16.msra.mxu0 %v825
        %870 = vmatprep.subr.bf16.mxu0 0
        %871 = vmatpush1.bf16.msra.mxu0 %v826
        %872 = vmatprep.subr.bf16.mxu0 0
        %873 = vmatpush1.bf16.msra.mxu0 %v827
        %874 = vmatprep.subr.bf16.mxu0 0
        %875 = vmatpush1.bf16.msra.mxu0 %v828
        %876 = vmatprep.subr.bf16.mxu0 0
        %877 = vmatpush1.bf16.msra.mxu0 %v829
        %878 = vmatprep.mubr.bf16.mxu0 %v708
        %879 = vmatmul.mubr.bf16.gmra.mrb[0].mxu0 %v707
        %v880 = vpop.f32.mrb[0].mxu0
        %v881 = vadd.f32 %v748, %v880
        %v882 = vpop.f32.mrb[0].mxu0
        %v883 = vpop.f32.mrb[0].mxu0
        %v884 = vadd.f32 %v748, %v883
        %v885 = vpop.f32.mrb[0].mxu0
        %886 = vmatprep.mubr.bf16.mxu0 %v710
        %887 = vmatmul.mubr.bf16.gmra.mrb[0].mxu0 %v709
        %v888 = vpop.f32.mrb[0].mxu0
        %v889 = vadd.f32 %v748, %v888
        %v890 = vpop.f32.mrb[0].mxu0
        %v891 = vpop.f32.mrb[0].mxu0
        %v892 = vadd.f32 %v748, %v891
        %v893 = vpop.f32.mrb[0].mxu0
        %894 = vdwg.mxu0
        %v895 = vpack.c.bf16 %v884, %v881
        %v896 = vpack.c.bf16 %v892, %v889
        %v899 = vunpack.c.l.b16 %v895
        %v900 = vunpack.c.h.b16 %v895
        %v901 = vunpack.c.l.b16 %v896
        %v902 = vunpack.c.h.b16 %v896
        %v903 = vpack.c.b16 %v899, %v899
        %v904 = vpack.c.b16 %v900, %v900
        %v905 = vpack.c.b16 %v901, %v901
        %v906 = vpack.c.b16 %v902, %v902
        %911 = vst [vmem:[%s344] sm:$0xf] %v903
        %912 = vst [vmem:[%s344 + $0x4] sm:$0xf] %v904
        %913 = vst [vmem:[%s344 + $0x8] sm:$0xf] %v905
        %914 = vst [vmem:[%s344 + $0xc] sm:$0xf] %v906
        %s915 = sand.u32 %s210, 1
        %s916 = scalar_lea.sflag [#allocation4], %s915
        %s917 = sand.u32 %s210, 1
        %s918 = smul.addr %s917, 16
        %s919 = scalar_lea.vmem [#allocation7], %s918
        // Predicated region
        $region61: #{tpu_custom_call.1} parent=51 // pred_check
          %p920 = pneg %p220
        $region62: #{tpu_custom_call.1} parent=51 // pred_check_branch
          %922 = sbr.rel (%p920) target = $region64
        $region63: #{tpu_custom_call.1} parent=51 // pred_region
          %s923 = smul.u32 4, %s24
          %s925 = ssub.s32 256, 256
          %926 = vsyncadd %s916, %s925
          %s927 = smul.addr %s923, 64
          %s928 = scalar_lea.hbm %s8, %s927
          %s929 = sshll.u32 %s919, 4
          %s930 = int_to_ptr.vmem [resolvable:$true] %s929
          %935 = dma.vmem_to_hbm [thread:$0]  %s930, 256, %s928, %s916, 64, 64, 4
        $region64: #{tpu_custom_call.1} parent=51 // pred_fallthru
          _
      $region52: #{tpu_custom_call.1} parent=5 // pred_fallthru
        _
      %p936 = scmp.le.s32.totalorder 2, %s19
      // Predicated region
      $region65: #{tpu_custom_call.1} parent=5 // pred_check
        %p937 = pneg %p936
      $region66: #{tpu_custom_call.1} parent=5 // pred_check_branch
        %939 = sbr.rel (%p937) target = $region68
      $region67: #{tpu_custom_call.1} parent=5 // pred_region
        %s940 = ssub.s32 %s19, 2
        // Predicated region
        $region69: #{tpu_custom_call.1} parent=67 // pred_check
          %p941 = pneg %p226
        $region70: #{tpu_custom_call.1} parent=67 // pred_check_branch
          %943 = sbr.rel (%p941) target = $region72
        $region71: #{tpu_custom_call.1} parent=67 // pred_region
          %s944 = sand.u32 %s211, 1
          %s945 = scalar_lea.sflag [#allocation4], %s944
          %s946 = sand.u32 %s211, 1
          %s947 = smul.addr %s946, 16
          %s948 = scalar_lea.vmem [#allocation7], %s947
          %949 = dma.done %s945, 256
        $region72: #{tpu_custom_call.1} parent=67 // pred_fallthru
          _
      $region68: #{tpu_custom_call.1} parent=5 // pred_fallthru
        _
    $region6: #{tpu_custom_call.1} parent=1 // loop_footer
      %s23 = sadd.s32 1, %s19
    $region7: #{tpu_custom_call.1} parent=1 // loop_footer_branch
      %18 = sbr.rel target = $region3
    $region8: #{tpu_custom_call.1} parent=1 // loop_exit
      _
    %950 = vsyncpa [#allocation3], 1
    %s951 = scalar_lea.sflag [#allocation3], 1
    %952 = vsyncpa %s951, 1
    %953 = vsyncpa [#allocation4], 1
    %s954 = scalar_lea.sflag [#allocation4], 1
    %955 = vsyncpa %s954, 1
    %956 = vsyncpa [#allocation5], 1
    %s957 = scalar_lea.sflag [#allocation5], 1
    %958 = vsyncpa %s957, 1

</llo_original>
